<compile_context>
chip_gen: v6e
topology: v6e:2x2x1
jax: 0.10.0
libtpu: 0.0.40
codegen_flags: <defaults>
</compile_context>

<pallas_src>
import functools

import jax
import jax.numpy as jnp
from jax.experimental import pallas as pl
from jax.experimental.pallas import tpu as pltpu


def _round_up(x: int, m: int) -> int:
    return ((x + m - 1) // m) * m


# ---------------------------------------------------------------------------
# Kernel 1: one-shot prep of the t_z path (runs once, not per Ne tile).
#   w_zT  = Wl_w @ t_z^T + bl_w[:, None]   -> (Hp, Ntp)
#   b_row = Wl_b @ t_z^T + bl_b            -> (1, Ntp)  (padded cols = -1e30)
# ---------------------------------------------------------------------------
def _prep_kernel(tT_ref, wlw_ref, blw_ref, wlb_ref, bmask_ref, wz_ref, brow_ref):
    wz = jnp.dot(wlw_ref[...], tT_ref[...],
                 preferred_element_type=jnp.float32) + blw_ref[...]
    wz_ref[...] = wz.astype(wz_ref.dtype)
    brow_ref[...] = jnp.dot(wlb_ref[...], tT_ref[...],
                            preferred_element_type=jnp.float32) + bmask_ref[...]


# ---------------------------------------------------------------------------
# Kernel 2: main kernel, tiled over Ne.  All matmuls are transpose-free.
# ---------------------------------------------------------------------------
def _linker_kernel(e_ref, wk_ref, bk_ref, wz_ref, brow_ref, o_ref):
    # w_i = e_z @ Wk^T + bk        (TM, Hp), f32 accumulation on the MXU.
    w_i = jnp.dot(e_ref[...], wk_ref[...],
                  preferred_element_type=jnp.float32) + bk_ref[...]
    # logits = w_i @ w_z^T + b_z   (TM, Ntp); RHS already oriented (Hp, Ntp).
    logits = jnp.dot(w_i.astype(wz_ref.dtype), wz_ref[...],
                     preferred_element_type=jnp.float32) + brow_ref[...]
    # -log_softmax over the lane (Nt) axis, stable shifted log-sum-exp in f32.
    m = jnp.max(logits, axis=-1, keepdims=True)
    shifted = logits - m
    lse = jnp.log(jnp.sum(jnp.exp(shifted), axis=-1, keepdims=True))
    o_ref[...] = lse - shifted            # == -(shifted - lse) == -log_softmax


# ---------------------------------------------------------------------------
# Wrapper
# ---------------------------------------------------------------------------
@jax.jit
def linker_forward(t_z, e_z, wk, bk, wl, bl):
    """t_z: (Nt, L), e_z: (Ne, L).
    wk: (H, L), bk: (H,)      -- PyTorch Linear layout (out, in)
    wl: (H+1, L), bl: (H+1,)
    returns lp: (Ne, Nt) float32
    """
    Nt, L = t_z.shape
    Ne, _ = e_z.shape
    H = wk.shape[0]

    Hp = _round_up(H, 128)          # lane-align the hidden dim
    Ntp = _round_up(Nt, 128)        # lane-dense output stores

    # --- choose the Ne tile so a double-buffered step fits a v7x VMEM budget.
    budget = 32 * 1024 * 1024
    def _footprint(tm):
        dbl = 2 * (tm * L * 2          # e block (bf16)
                   + L * Hp * 2        # Wk^T (bf16)
                   + Hp * 4            # bk row (f32)
                   + Hp * Ntp * 2      # w_z^T (bf16)
                   + Ntp * 4           # b_z row (f32)
                   + tm * Ntp * 4)     # output block (f32)
        temps = tm * Hp * 4 + 3 * tm * Ntp * 4     # in-kernel f32 intermediates
        return dbl + temps

    TM = min(256, _round_up(Ne, 8))
    while TM > 16 and _footprint(TM) > budget:
        TM = max(16, (TM // 2 // 8) * 8)
    Ne_p = _round_up(Ne, TM)

    # --- wrapper glue: cast / transpose / pad once in XLA (HBM side).
    f32 = jnp.float32
    e32, t32 = jnp.asarray(e_z, f32), jnp.asarray(t_z, f32)
    wk32, bk32 = jnp.asarray(wk, f32), jnp.asarray(bk, f32)
    wl32, bl32 = jnp.asarray(wl, f32), jnp.asarray(bl, f32)

    e_p = jnp.pad(e32, ((0, Ne_p - Ne), (0, 0))).astype(jnp.bfloat16)      # (Ne_p, L)
    wk_t_p = jnp.pad(wk32.T, ((0, 0), (0, Hp - H))).astype(jnp.bfloat16)   # (L, Hp)
    bk_p = jnp.pad(bk32, (0, Hp - H)).reshape(1, Hp)                       # (1, Hp) f32

    tT_p = jnp.pad(t32.T, ((0, 0), (0, Ntp - Nt))).astype(jnp.bfloat16)    # (L, Ntp)
    wlw_p = jnp.pad(wl32[:H], ((0, Hp - H), (0, 0))).astype(jnp.bfloat16)  # (Hp, L)
    blw_p = jnp.pad(bl32[:H], (0, Hp - H)).reshape(Hp, 1)                  # (Hp, 1) f32
    wlb = wl32[H:H + 1].astype(jnp.bfloat16)                               # (1, L)
    # bias row for the logits: bl[-1] on real columns, -1e30 on padded ones
    bmask = jnp.where(jnp.arange(Ntp) < Nt, bl32[H],
                      f32(-1e30)).astype(f32).reshape(1, Ntp)              # (1, Ntp)

    vmem = pl.BlockSpec(memory_space=pltpu.MemorySpace.VMEM)

    # --- kernel 1: compute w_z^T and b_z once (shared by every Ne tile).
    wz_p, brow_p = pl.pallas_call(
        _prep_kernel,
        out_shape=(jax.ShapeDtypeStruct((Hp, Ntp), jnp.bfloat16),
                   jax.ShapeDtypeStruct((1, Ntp), jnp.float32)),
        in_specs=[vmem] * 5,
        out_specs=(vmem, vmem),
    )(tT_p, wlw_p, blw_p, wlb, bmask)

    # --- kernel 2: tiled over Ne, double-buffered HBM<->VMEM pipeline.
    cost = pl.CostEstimate(
        flops=2 * Ne_p * L * Hp + 2 * Ne_p * Hp * Ntp,
        transcendentals=Ne_p * Ntp,
        bytes_accessed=(e_p.size * 2 + wk_t_p.size * 2 + bk_p.size * 4
                        + Hp * Ntp * 2 + Ntp * 4 + Ne_p * Ntp * 4),
    )
    out_p = pl.pallas_call(
        _linker_kernel,
        out_shape=jax.ShapeDtypeStruct((Ne_p, Ntp), jnp.float32),
        grid_spec=pltpu.PrefetchScalarGridSpec(
            num_scalar_prefetch=0,
            grid=(Ne_p // TM,),
            in_specs=[
                pl.BlockSpec((TM, L), lambda i: (i, 0)),      # e_z row block
                pl.BlockSpec((L, Hp), lambda i: (0, 0)),      # Wk^T (resident)
                pl.BlockSpec((1, Hp), lambda i: (0, 0)),      # bk row
                pl.BlockSpec((Hp, Ntp), lambda i: (0, 0)),    # w_z^T (resident)
                pl.BlockSpec((1, Ntp), lambda i: (0, 0)),     # b_z row (masked)
            ],
            out_specs=pl.BlockSpec((TM, Ntp), lambda i: (i, 0)),
        ),
        compiler_params=pltpu.CompilerParams(
            dimension_semantics=("parallel",),
            vmem_limit_bytes=48 * 1024 * 1024,
        ),
        cost_estimate=cost,
    )(e_p, wk_t_p, bk_p, wz_p, brow_p)

    return out_p[:Ne, :Nt]


def linker_reference(t_z, e_z, wk, bk, wl, bl):
    w_i = e_z @ wk.T + bk
    wb_z = t_z @ wl.T + bl
    w_z, b_z = wb_z[..., :-1], wb_z[..., -1]
    logits = w_i @ w_z.T + b_z
    return -jax.nn.log_softmax(logits, axis=-1)


if __name__ == "__main__":
    latent_dim = 32
    h_dim = 64
    n_t = 8   # rows of t_z
    n_e = 8   # rows of e_z

    key = jax.random.PRNGKey(0)
    k1, k2, k3, k4, k5, k6 = jax.random.split(key, 6)

    # deterministic synthetic parameters (PyTorch Linear shapes: (out, in))
    wk = jax.random.normal(k1, (h_dim, latent_dim), jnp.float32) * 0.1
    bk = jax.random.normal(k2, (h_dim,), jnp.float32) * 0.1
    wl = jax.random.normal(k3, (h_dim + 1, latent_dim), jnp.float32) * 0.1
    bl = jax.random.normal(k4, (h_dim + 1,), jnp.float32) * 0.1

    t_z = jax.random.normal(k5, (n_t, latent_dim), jnp.float32)
    e_z = jax.random.normal(k6, (n_e, latent_dim), jnp.float32)

    lp = linker_forward(t_z, e_z, wk, bk, wl, bl)
    lp = jax.block_until_ready(lp)

    ref = linker_reference(t_z, e_z, wk, bk, wl, bl)
    assert lp.shape == (n_e, n_t)
    # bf16 MXU operands with f32 accumulation -> slightly looser tolerance
    assert jnp.allclose(lp, ref, atol=5e-2, rtol=5e-2), "mismatch vs reference"

    print("KERNEL_OK")
</pallas_src>

<mosaic_0001>
module attributes {stable_mosaic.version = 11 : i64} {
  func.func @_prep_kernel(%arg0: memref<32x128xbf16, #tpu.memory_space<vmem>>, %arg1: memref<128x32xbf16, #tpu.memory_space<vmem>>, %arg2: memref<128x1xf32, #tpu.memory_space<vmem>>, %arg3: memref<1x32xbf16, #tpu.memory_space<vmem>>, %arg4: memref<1x128xf32, #tpu.memory_space<vmem>>, %arg5: memref<128x128xbf16, #tpu.memory_space<vmem>>, %arg6: memref<1x128xf32, #tpu.memory_space<vmem>>) attributes {dimension_semantics = [], scalar_prefetch = 0 : i64, scratch_operands = 0 : i64, tpu.core_type = #tpu.core_type<tc>} {
    %c0 = arith.constant 0 : index
    %c0_0 = arith.constant 0 : index
    %0 = vector.load %arg1[%c0, %c0_0] : memref<128x32xbf16, #tpu.memory_space<vmem>>, vector<128x32xbf16>
    %c0_1 = arith.constant 0 : index
    %c0_2 = arith.constant 0 : index
    %1 = vector.load %arg0[%c0_1, %c0_2] : memref<32x128xbf16, #tpu.memory_space<vmem>>, vector<32x128xbf16>
    %cst = arith.constant dense<0.000000e+00> : vector<128x128xf32>
    %2 = tpu.matmul %0, %1, %cst {dimension_numbers = #tpu.dot_dimension_numbers<[1], [0], [0], [1], [0, 0, 1, 1], [], []>} : vector<128x32xbf16>, vector<32x128xbf16>, vector<128x128xf32> -> vector<128x128xf32>
    %c0_3 = arith.constant 0 : index
    %c0_4 = arith.constant 0 : index
    %3 = vector.load %arg2[%c0_3, %c0_4] : memref<128x1xf32, #tpu.memory_space<vmem>>, vector<128x1xf32>
    %4 = vector.broadcast %3 : vector<128x1xf32> to vector<128x128xf32>
    %5 = arith.addf %2, %4 : vector<128x128xf32>
    %6 = arith.truncf %5 : vector<128x128xf32> to vector<128x128xbf16>
    %c0_5 = arith.constant 0 : index
    %c0_6 = arith.constant 0 : index
    %7 = vector.load %arg5[%c0_5, %c0_6] : memref<128x128xbf16, #tpu.memory_space<vmem>>, vector<128x128xbf16>
    tpu.vector_store %arg5[%c0_5, %c0_6], %6 {strides = array<i32>} : memref<128x128xbf16, #tpu.memory_space<vmem>>, vector<128x128xbf16>,
    %c0_7 = arith.constant 0 : index
    %c0_8 = arith.constant 0 : index
    %8 = vector.load %arg3[%c0_7, %c0_8] : memref<1x32xbf16, #tpu.memory_space<vmem>>, vector<1x32xbf16>
    %c0_9 = arith.constant 0 : index
    %c0_10 = arith.constant 0 : index
    %9 = vector.load %arg0[%c0_9, %c0_10] : memref<32x128xbf16, #tpu.memory_space<vmem>>, vector<32x128xbf16>
    %cst_11 = arith.constant dense<0.000000e+00> : vector<1x128xf32>
    %10 = tpu.matmul %8, %9, %cst_11 {dimension_numbers = #tpu.dot_dimension_numbers<[1], [0], [0], [1], [0, 0, 1, 1], [], []>} : vector<1x32xbf16>, vector<32x128xbf16>, vector<1x128xf32> -> vector<1x128xf32>
    %c0_12 = arith.constant 0 : index
    %c0_13 = arith.constant 0 : index
    %11 = vector.load %arg4[%c0_12, %c0_13] : memref<1x128xf32, #tpu.memory_space<vmem>>, vector<1x128xf32>
    %12 = arith.addf %10, %11 : vector<1x128xf32>
    %c0_14 = arith.constant 0 : index
    %c0_15 = arith.constant 0 : index
    %13 = vector.load %arg6[%c0_14, %c0_15] : memref<1x128xf32, #tpu.memory_space<vmem>>, vector<1x128xf32>
    tpu.vector_store %arg6[%c0_14, %c0_15], %12 {strides = array<i32>} : memref<1x128xf32, #tpu.memory_space<vmem>>, vector<1x128xf32>,
    return
  }
}

module attributes {stable_mosaic.version = 11 : i64} {
  func.func @_linker_kernel(%arg0: i32, %arg1: memref<8x32xbf16, #tpu.memory_space<vmem>>, %arg2: memref<32x128xbf16, #tpu.memory_space<vmem>>, %arg3: memref<1x128xf32, #tpu.memory_space<vmem>>, %arg4: memref<128x128xbf16, #tpu.memory_space<vmem>>, %arg5: memref<1x128xf32, #tpu.memory_space<vmem>>, %arg6: memref<8x128xf32, #tpu.memory_space<vmem>>) attributes {dimension_semantics = [#tpu.dimension_semantics<parallel>], iteration_bounds = array<i64: 1>, scalar_prefetch = 0 : i64, scratch_operands = 0 : i64, tpu.core_type = #tpu.core_type<tc>, window_params = [{transform_indices = @transform_0, window_bounds = array<i64: 8, 32>}, {pipeline_mode = #tpu.pipeline_mode<synchronous>, transform_indices = @transform_1, window_bounds = array<i64: 32, 128>}, {pipeline_mode = #tpu.pipeline_mode<synchronous>, transform_indices = @transform_2, window_bounds = array<i64: 1, 128>}, {pipeline_mode = #tpu.pipeline_mode<synchronous>, transform_indices = @transform_3, window_bounds = array<i64: 128, 128>}, {pipeline_mode = #tpu.pipeline_mode<synchronous>, transform_indices = @transform_4, window_bounds = array<i64: 1, 128>}, {transform_indices = @transform_5, window_bounds = array<i64: 8, 128>}]} {
    %c0 = arith.constant 0 : index
    %c0_0 = arith.constant 0 : index
    %0 = vector.load %arg1[%c0, %c0_0] : memref<8x32xbf16, #tpu.memory_space<vmem>>, vector<8x32xbf16>
    %c0_1 = arith.constant 0 : index
    %c0_2 = arith.constant 0 : index
    %1 = vector.load %arg2[%c0_1, %c0_2] : memref<32x128xbf16, #tpu.memory_space<vmem>>, vector<32x128xbf16>
    %cst = arith.constant dense<0.000000e+00> : vector<8x128xf32>
    %2 = tpu.matmul %0, %1, %cst {dimension_numbers = #tpu.dot_dimension_numbers<[1], [0], [0], [1], [0, 0, 1, 1], [], []>} : vector<8x32xbf16>, vector<32x128xbf16>, vector<8x128xf32> -> vector<8x128xf32>
    %c0_3 = arith.constant 0 : index
    %c0_4 = arith.constant 0 : index
    %3 = vector.load %arg3[%c0_3, %c0_4] : memref<1x128xf32, #tpu.memory_space<vmem>>, vector<1x128xf32>
    %4 = vector.broadcast %3 : vector<1x128xf32> to vector<8x128xf32>
    %5 = arith.addf %2, %4 : vector<8x128xf32>
    %6 = arith.truncf %5 : vector<8x128xf32> to vector<8x128xbf16>
    %c0_5 = arith.constant 0 : index
    %c0_6 = arith.constant 0 : index
    %7 = vector.load %arg4[%c0_5, %c0_6] : memref<128x128xbf16, #tpu.memory_space<vmem>>, vector<128x128xbf16>
    %cst_7 = arith.constant dense<0.000000e+00> : vector<8x128xf32>
    %8 = tpu.matmul %6, %7, %cst_7 {dimension_numbers = #tpu.dot_dimension_numbers<[1], [0], [0], [1], [0, 0, 1, 1], [], []>} : vector<8x128xbf16>, vector<128x128xbf16>, vector<8x128xf32> -> vector<8x128xf32>
    %c0_8 = arith.constant 0 : index
    %c0_9 = arith.constant 0 : index
    %9 = vector.load %arg5[%c0_8, %c0_9] : memref<1x128xf32, #tpu.memory_space<vmem>>, vector<1x128xf32>
    %10 = vector.broadcast %9 : vector<1x128xf32> to vector<8x128xf32>
    %11 = arith.addf %8, %10 : vector<8x128xf32>
    %cst_10 = arith.constant dense<0xFF800000> : vector<8xf32>
    %12 = vector.multi_reduction <maximumf>, %11, %cst_10 [1] : vector<8x128xf32> to vector<8xf32>
    %13 = vector.shape_cast %12 : vector<8xf32> to vector<8x1xf32>
    %14 = vector.broadcast %13 : vector<8x1xf32> to vector<8x128xf32>
    %15 = arith.subf %11, %14 : vector<8x128xf32>
    %16 = math.exp %15 : vector<8x128xf32>
    %cst_11 = arith.constant dense<0.000000e+00> : vector<8xf32>
    %17 = vector.multi_reduction <add>, %16, %cst_11 [1] : vector<8x128xf32> to vector<8xf32>
    %18 = vector.shape_cast %17 : vector<8xf32> to vector<8x1xf32>
    %19 = math.log %18 : vector<8x1xf32>
    %20 = vector.broadcast %19 : vector<8x1xf32> to vector<8x128xf32>
    %21 = arith.subf %20, %15 : vector<8x128xf32>
    %c0_12 = arith.constant 0 : index
    %c0_13 = arith.constant 0 : index
    %22 = vector.load %arg6[%c0_12, %c0_13] : memref<8x128xf32, #tpu.memory_space<vmem>>, vector<8x128xf32>
    tpu.vector_store %arg6[%c0_12, %c0_13], %21 {strides = array<i32>} : memref<8x128xf32, #tpu.memory_space<vmem>>, vector<8x128xf32>,
    return
  }
  func.func @transform_0(%arg0: i32) -> (i32, i32) {
    %c0_i32 = arith.constant 0 : i32
    %c0_i32_0 = arith.constant 0 : i32
    return %arg0, %c0_i32 : i32, i32
  }
  func.func @transform_1(%arg0: i32) -> (i32, i32) {
    %c0_i32 = arith.constant 0 : i32
    %c0_i32_0 = arith.constant 0 : i32
    %c0_i32_1 = arith.constant 0 : i32
    return %c0_i32, %c0_i32_0 : i32, i32
  }
  func.func @transform_2(%arg0: i32) -> (i32, i32) {
    %c0_i32 = arith.constant 0 : i32
    %c0_i32_0 = arith.constant 0 : i32
    %c0_i32_1 = arith.constant 0 : i32
    return %c0_i32, %c0_i32_0 : i32, i32
  }
  func.func @transform_3(%arg0: i32) -> (i32, i32) {
    %c0_i32 = arith.constant 0 : i32
    %c0_i32_0 = arith.constant 0 : i32
    %c0_i32_1 = arith.constant 0 : i32
    return %c0_i32, %c0_i32_0 : i32, i32
  }
  func.func @transform_4(%arg0: i32) -> (i32, i32) {
    %c0_i32 = arith.constant 0 : i32
    %c0_i32_0 = arith.constant 0 : i32
    %c0_i32_1 = arith.constant 0 : i32
    return %c0_i32, %c0_i32_0 : i32, i32
  }
  func.func @transform_5(%arg0: i32) -> (i32, i32) {
    %c0_i32 = arith.constant 0 : i32
    %c0_i32_0 = arith.constant 0 : i32
    return %arg0, %c0_i32 : i32, i32
  }
}

</mosaic_0001>

<llo_original>
// kernel: linker_forward.2
$region0: #{linker_forward.2}
  #allocation0 [shape = 'u32[]', space=smem, size = 0x4, offset = 0x4, fixed_abs, tag = 'smem constant byte address 0x4 - core index']
  #allocation1 [shape = 'u32[144,128]{1,0:T(1,128)}', space=vmem, size = 0x12000, scoped, tag = 'internal scratch']
  %s0 = inlined_call_operand.vmem [shape: bf16[32,128], index: 0, kind: input, shape index: {}]
  %s1 = inlined_call_operand.vmem [shape: bf16[128,32], index: 1, kind: input, shape index: {}]
  %s2 = inlined_call_operand.vmem [shape: f32[128,1], index: 2, kind: input, shape index: {}]
  %s3 = inlined_call_operand.vmem [shape: bf16[1,32], index: 3, kind: input, shape index: {}]
  %s4 = inlined_call_operand.vmem [shape: f32[1,128], index: 4, kind: input, shape index: {}]
  %s5 = inlined_call_operand.vmem [shape: bf16[128,128], index: 5, kind: output, shape index: {0}]
  %s6 = inlined_call_operand.vmem [shape: f32[1,128], index: 6, kind: output, shape index: {1}]
  %7 = xla_tuple %s5, %s6
  %s8 = sld [smem:[#allocation0]]
  $region38: #{linker_forward.2} parent=0
    _
  %s10 = ssub.s32 1, %s8
  %s11 = scalar_select 0, %s10, %s8
  // Predicated region
  $region2: #{linker_forward.2} parent=0 // pred_check
    _
  $region3: #{linker_forward.2} parent=0 // pred_check_branch
    %13 = sbr.rel (0) target = $region5
  $region4: #{linker_forward.2} parent=0 // pred_region
    _
  $region5: #{linker_forward.2} parent=0 // pred_fallthru
    _
  // Predicated region
  $region6: #{linker_forward.2} parent=0 // pred_check
    _
  $region7: #{linker_forward.2} parent=0 // pred_check_branch
    %15 = sbr.rel (0) target = $region9
  $region8: #{linker_forward.2} parent=0 // pred_region
    _
  $region9: #{linker_forward.2} parent=0 // pred_fallthru
    _
  // Predicated region
  $region10: #{linker_forward.2} parent=0 // pred_check
    _
  $region11: #{linker_forward.2} parent=0 // pred_check_branch
    %17 = sbr.rel (0) target = $region13
  $region12: #{linker_forward.2} parent=0 // pred_region
    _
  $region13: #{linker_forward.2} parent=0 // pred_fallthru
    _
  // Predicated region
  $region14: #{linker_forward.2} parent=0 // pred_check
    _
  $region15: #{linker_forward.2} parent=0 // pred_check_branch
    %19 = sbr.rel (0) target = $region17
  $region16: #{linker_forward.2} parent=0 // pred_region
    _
  $region17: #{linker_forward.2} parent=0 // pred_fallthru
    _
  // Predicated region
  $region18: #{linker_forward.2} parent=0 // pred_check
    _
  $region19: #{linker_forward.2} parent=0 // pred_check_branch
    %21 = sbr.rel (0) target = $region21
  $region20: #{linker_forward.2} parent=0 // pred_region
    _
  $region21: #{linker_forward.2} parent=0 // pred_fallthru
    _
  %v23 = vld [vmem:[%s1] sm:$0xf]
  %v24 = vld [vmem:[%s1 + $0x4] sm:$0xf]
  %v25 = vld [vmem:[%s1 + $0x8] sm:$0xf]
  %v26 = vld [vmem:[%s1 + $0xc] sm:$0xf]
  %v27 = vld [vmem:[%s1 + $0x10] sm:$0xf]
  %v28 = vld [vmem:[%s1 + $0x14] sm:$0xf]
  %v29 = vld [vmem:[%s1 + $0x18] sm:$0xf]
  %v30 = vld [vmem:[%s1 + $0x1c] sm:$0xf]
  %v31 = vld [vmem:[%s1 + $0x20] sm:$0xf]
  %v32 = vld [vmem:[%s1 + $0x24] sm:$0xf]
  %v33 = vld [vmem:[%s1 + $0x28] sm:$0xf]
  %v34 = vld [vmem:[%s1 + $0x2c] sm:$0xf]
  %v35 = vld [vmem:[%s1 + $0x30] sm:$0xf]
  %v36 = vld [vmem:[%s1 + $0x34] sm:$0xf]
  %v37 = vld [vmem:[%s1 + $0x38] sm:$0xf]
  %v38 = vld [vmem:[%s1 + $0x3c] sm:$0xf]
  %v39 = vld [vmem:[%s0] sm:$0xf]
  %v40 = vld [vmem:[%s0 + $0x4] sm:$0xf]
  %v41 = vld [vmem:[%s0 + $0x8] sm:$0xf]
  %v42 = vld [vmem:[%s0 + $0xc] sm:$0xf]
  %v43 = vld [vmem:[%s2] sm:$0xff]
  %v44 = vld [vmem:[%s2 + $0x8] sm:$0xff]
  %v45 = vld [vmem:[%s2 + $0x10] sm:$0xff]
  %v46 = vld [vmem:[%s2 + $0x18] sm:$0xff]
  %v47 = vld [vmem:[%s2 + $0x20] sm:$0xff]
  %v48 = vld [vmem:[%s2 + $0x28] sm:$0xff]
  %v49 = vld [vmem:[%s2 + $0x30] sm:$0xff]
  %v50 = vld [vmem:[%s2 + $0x38] sm:$0xff]
  %v51 = vld [vmem:[%s2 + $0x40] sm:$0xff]
  %v52 = vld [vmem:[%s2 + $0x48] sm:$0xff]
  %v53 = vld [vmem:[%s2 + $0x50] sm:$0xff]
  %v54 = vld [vmem:[%s2 + $0x58] sm:$0xff]
  %v55 = vld [vmem:[%s2 + $0x60] sm:$0xff]
  %v56 = vld [vmem:[%s2 + $0x68] sm:$0xff]
  %v57 = vld [vmem:[%s2 + $0x70] sm:$0xff]
  %v58 = vld [vmem:[%s2 + $0x78] sm:$0xff]
  %60 = vset.pattern.permute.xlu0 0
  %61 = vperm.xlu0 %60, %v43
  %v62 = vpop.permute.xlu0 %61
  %65 = vset.pattern.permute.xlu0 0
  %66 = vperm.xlu0 %65, %v44
  %v67 = vpop.permute.xlu0 %66
  %70 = vset.pattern.permute.xlu0 0
  %71 = vperm.xlu0 %70, %v45
  %v72 = vpop.permute.xlu0 %71
  %75 = vset.pattern.permute.xlu0 0
  %76 = vperm.xlu0 %75, %v46
  %v77 = vpop.permute.xlu0 %76
  %80 = vset.pattern.permute.xlu0 0
  %81 = vperm.xlu0 %80, %v47
  %v82 = vpop.permute.xlu0 %81
  %85 = vset.pattern.permute.xlu0 0
  %86 = vperm.xlu0 %85, %v48
  %v87 = vpop.permute.xlu0 %86
  %90 = vset.pattern.permute.xlu0 0
  %91 = vperm.xlu0 %90, %v49
  %v92 = vpop.permute.xlu0 %91
  %95 = vset.pattern.permute.xlu0 0
  %96 = vperm.xlu0 %95, %v50
  %v97 = vpop.permute.xlu0 %96
  %100 = vset.pattern.permute.xlu0 0
  %101 = vperm.xlu0 %100, %v51
  %v102 = vpop.permute.xlu0 %101
  %105 = vset.pattern.permute.xlu0 0
  %106 = vperm.xlu0 %105, %v52
  %v107 = vpop.permute.xlu0 %106
  %110 = vset.pattern.permute.xlu0 0
  %111 = vperm.xlu0 %110, %v53
  %v112 = vpop.permute.xlu0 %111
  %115 = vset.pattern.permute.xlu0 0
  %116 = vperm.xlu0 %115, %v54
  %v117 = vpop.permute.xlu0 %116
  %120 = vset.pattern.permute.xlu0 0
  %121 = vperm.xlu0 %120, %v55
  %v122 = vpop.permute.xlu0 %121
  %125 = vset.pattern.permute.xlu0 0
  %126 = vperm.xlu0 %125, %v56
  %v127 = vpop.permute.xlu0 %126
  %130 = vset.pattern.permute.xlu0 0
  %131 = vperm.xlu0 %130, %v57
  %v132 = vpop.permute.xlu0 %131
  %135 = vset.pattern.permute.xlu0 0
  %136 = vperm.xlu0 %135, %v58
  %v137 = vpop.permute.xlu0 %136
  %v155 = vunpack.c.l.b16 %v23
  %v156 = vunpack.c.l.b16 %v24
  %v157 = vunpack.c.l.b16 %v25
  %v158 = vunpack.c.l.b16 %v26
  %v159 = vunpack.c.l.b16 %v27
  %v160 = vunpack.c.l.b16 %v28
  %v161 = vunpack.c.l.b16 %v29
  %v162 = vunpack.c.l.b16 %v30
  %v163 = vunpack.c.l.b16 %v31
  %v164 = vunpack.c.l.b16 %v32
  %v165 = vunpack.c.l.b16 %v33
  %v166 = vunpack.c.l.b16 %v34
  %v167 = vunpack.c.l.b16 %v35
  %v168 = vunpack.c.l.b16 %v36
  %v169 = vunpack.c.l.b16 %v37
  %v170 = vunpack.c.l.b16 %v38
  %v171 = vpack.c.b16 %v156, %v155
  %v172 = vpack.c.b16 %v158, %v157
  %v173 = vpack.c.b16 %v160, %v159
  %v174 = vpack.c.b16 %v162, %v161
  %v175 = vpack.c.b16 %v164, %v163
  %v176 = vpack.c.b16 %v166, %v165
  %v177 = vpack.c.b16 %v168, %v167
  %v178 = vpack.c.b16 %v170, %v169
  %v183 = vunpack.c.l.b16 %v39
  %v184 = vunpack.c.l.b16 %v40
  %v185 = vunpack.c.l.b16 %v41
  %v186 = vunpack.c.l.b16 %v42
  %v187 = vpack.c.b16 %v184, %v183
  %v188 = vpack.c.b16 %v186, %v185
  %vm191 = vcmask 261120
  %v193 = vsel %vm191, %v171, 0
  %v196 = vsel %vm191, %v172, 0
  %v199 = vsel %vm191, %v173, 0
  %v202 = vsel %vm191, %v174, 0
  %v205 = vsel %vm191, %v175, 0
  %v208 = vsel %vm191, %v176, 0
  %v211 = vsel %vm191, %v177, 0
  %v214 = vsel %vm191, %v178, 0
  %216 = vmatprep.subr.bf16.mxu0 0
  %217 = vmatpush1.bf16.msra.mxu0 0
  %218 = vmatprep.subr.bf16.mxu0 0
  %219 = vmatpush1.bf16.msra.mxu0 0
  %220 = vmatprep.subr.bf16.mxu0 0
  %221 = vmatpush1.bf16.msra.mxu0 0
  %222 = vmatprep.subr.bf16.mxu0 0
  %223 = vmatpush1.bf16.msra.mxu0 0
  %224 = vmatprep.subr.bf16.mxu0 0
  %225 = vmatpush1.bf16.msra.mxu0 0
  %226 = vmatprep.subr.bf16.mxu0 0
  %227 = vmatpush1.bf16.msra.mxu0 0
  %228 = vmatprep.subr.bf16.mxu0 0
  %229 = vmatpush1.bf16.msra.mxu0 %v188
  %230 = vmatprep.subr.bf16.mxu0 0
  %231 = vmatpush1.bf16.msra.mxu0 %v187
  %232 = vmatprep.subr.bf16.mxu0 0
  %233 = vmatpush2.bf16.msra.mxu0 0
  %234 = vmatprep.subr.bf16.mxu0 0
  %235 = vmatpush2.bf16.msra.mxu0 0
  %236 = vmatprep.subr.bf16.mxu0 0
  %237 = vmatpush2.bf16.msra.mxu0 0
  %238 = vmatprep.subr.bf16.mxu0 0
  %239 = vmatpush2.bf16.msra.mxu0 0
  %240 = vmatprep.subr.bf16.mxu0 0
  %241 = vmatpush2.bf16.msra.mxu0 0
  %242 = vmatprep.subr.bf16.mxu0 0
  %243 = vmatpush2.bf16.msra.mxu0 0
  %244 = vmatprep.subr.bf16.mxu0 0
  %245 = vmatpush2.bf16.msra.mxu0 0
  %246 = vmatprep.subr.bf16.mxu0 0
  %247 = vmatpush2.bf16.msra.mxu0 0
  %248 = vmatprep.mubr.bf16.mxu0 0
  %249 = vmatmul.mubr.bf16.gmra.mxu0 %v193
  %v250 = vpop.f32.mrf.mxu0
  %v251 = vadd.f32 %v62, %v250
  %v252 = vpop.f32.mrf.mxu0
  %v253 = vpop.f32.mrf.mxu0
  %v254 = vadd.f32 %v67, %v253
  %v255 = vpop.f32.mrf.mxu0
  %256 = vmatprep.mubr.bf16.mxu0 0
  %257 = vmatmul.mubr.bf16.gmra.mxu0 %v196
  %v258 = vpop.f32.mrf.mxu0
  %v259 = vadd.f32 %v72, %v258
  %v260 = vpop.f32.mrf.mxu0
  %v261 = vpop.f32.mrf.mxu0
  %v262 = vadd.f32 %v77, %v261
  %v263 = vpop.f32.mrf.mxu0
  %264 = vmatprep.mubr.bf16.mxu0 0
  %265 = vmatmul.mubr.bf16.gmra.mxu0 %v199
  %v266 = vpop.f32.mrf.mxu0
  %v267 = vadd.f32 %v82, %v266
  %v268 = vpop.f32.mrf.mxu0
  %v269 = vpop.f32.mrf.mxu0
  %v270 = vadd.f32 %v87, %v269
  %v271 = vpop.f32.mrf.mxu0
  %272 = vmatprep.mubr.bf16.mxu0 0
  %273 = vmatmul.mubr.bf16.gmra.mxu0 %v202
  %v274 = vpop.f32.mrf.mxu0
  %v275 = vadd.f32 %v92, %v274
  %v276 = vpop.f32.mrf.mxu0
  %v277 = vpop.f32.mrf.mxu0
  %v278 = vadd.f32 %v97, %v277
  %v279 = vpop.f32.mrf.mxu0
  %280 = vmatprep.mubr.bf16.mxu0 0
  %281 = vmatmul.mubr.bf16.gmra.mxu0 %v205
  %v282 = vpop.f32.mrf.mxu0
  %v283 = vadd.f32 %v102, %v282
  %v284 = vpop.f32.mrf.mxu0
  %v285 = vpop.f32.mrf.mxu0
  %v286 = vadd.f32 %v107, %v285
  %v287 = vpop.f32.mrf.mxu0
  %288 = vmatprep.mubr.bf16.mxu0 0
  %289 = vmatmul.mubr.bf16.gmra.mxu0 %v208
  %v290 = vpop.f32.mrf.mxu0
  %v291 = vadd.f32 %v112, %v290
  %v292 = vpop.f32.mrf.mxu0
  %v293 = vpop.f32.mrf.mxu0
  %v294 = vadd.f32 %v117, %v293
  %v295 = vpop.f32.mrf.mxu0
  %296 = vmatprep.mubr.bf16.mxu0 0
  %297 = vmatmul.mubr.bf16.gmra.mxu0 %v211
  %v298 = vpop.f32.mrf.mxu0
  %v299 = vadd.f32 %v122, %v298
  %v300 = vpop.f32.mrf.mxu0
  %v301 = vpop.f32.mrf.mxu0
  %v302 = vadd.f32 %v127, %v301
  %v303 = vpop.f32.mrf.mxu0
  %304 = vmatprep.mubr.bf16.mxu0 0
  %305 = vmatmul.mubr.bf16.gmra.mxu0 %v214
  %v306 = vpop.f32.mrf.mxu0
  %v307 = vadd.f32 %v132, %v306
  %v308 = vpop.f32.mrf.mxu0
  %v309 = vpop.f32.mrf.mxu0
  %v310 = vadd.f32 %v137, %v309
  %v311 = vpop.f32.mrf.mxu0
  %312 = vdwg.mxu0
  %v313 = vpack.c.bf16 %v254, %v251
  %v314 = vpack.c.bf16 %v262, %v259
  %v315 = vpack.c.bf16 %v270, %v267
  %v316 = vpack.c.bf16 %v278, %v275
  %v317 = vpack.c.bf16 %v286, %v283
  %v318 = vpack.c.bf16 %v294, %v291
  %v319 = vpack.c.bf16 %v302, %v299
  %v320 = vpack.c.bf16 %v310, %v307
  %v329 = vunpack.c.l.b16 %v313
  %v330 = vunpack.c.h.b16 %v313
  %v331 = vunpack.c.l.b16 %v314
  %v332 = vunpack.c.h.b16 %v314
  %v333 = vunpack.c.l.b16 %v315
  %v334 = vunpack.c.h.b16 %v315
  %v335 = vunpack.c.l.b16 %v316
  %v336 = vunpack.c.h.b16 %v316
  %v337 = vunpack.c.l.b16 %v317
  %v338 = vunpack.c.h.b16 %v317
  %v339 = vunpack.c.l.b16 %v318
  %v340 = vunpack.c.h.b16 %v318
  %v341 = vunpack.c.l.b16 %v319
  %v342 = vunpack.c.h.b16 %v319
  %v343 = vunpack.c.l.b16 %v320
  %v344 = vunpack.c.h.b16 %v320
  %v345 = vpack.c.b16 %v329, %v329
  %v346 = vpack.c.b16 %v330, %v330
  %v347 = vpack.c.b16 %v331, %v331
  %v348 = vpack.c.b16 %v332, %v332
  %v349 = vpack.c.b16 %v333, %v333
  %v350 = vpack.c.b16 %v334, %v334
  %v351 = vpack.c.b16 %v335, %v335
  %v352 = vpack.c.b16 %v336, %v336
  %v353 = vpack.c.b16 %v337, %v337
  %v354 = vpack.c.b16 %v338, %v338
  %v355 = vpack.c.b16 %v339, %v339
  %v356 = vpack.c.b16 %v340, %v340
  %v357 = vpack.c.b16 %v341, %v341
  %v358 = vpack.c.b16 %v342, %v342
  %v359 = vpack.c.b16 %v343, %v343
  %v360 = vpack.c.b16 %v344, %v344
  %377 = vst [vmem:[%s5] sm:$0xf] %v345
  %378 = vst [vmem:[%s5 + $0x4] sm:$0xf] %v346
  %379 = vst [vmem:[%s5 + $0x8] sm:$0xf] %v347
  %380 = vst [vmem:[%s5 + $0xc] sm:$0xf] %v348
  %381 = vst [vmem:[%s5 + $0x10] sm:$0xf] %v349
  %382 = vst [vmem:[%s5 + $0x14] sm:$0xf] %v350
  %383 = vst [vmem:[%s5 + $0x18] sm:$0xf] %v351
  %384 = vst [vmem:[%s5 + $0x1c] sm:$0xf] %v352
  %385 = vst [vmem:[%s5 + $0x20] sm:$0xf] %v353
  %386 = vst [vmem:[%s5 + $0x24] sm:$0xf] %v354
  %387 = vst [vmem:[%s5 + $0x28] sm:$0xf] %v355
  %388 = vst [vmem:[%s5 + $0x2c] sm:$0xf] %v356
  %389 = vst [vmem:[%s5 + $0x30] sm:$0xf] %v357
  %390 = vst [vmem:[%s5 + $0x34] sm:$0xf] %v358
  %391 = vst [vmem:[%s5 + $0x38] sm:$0xf] %v359
  %392 = vst [vmem:[%s5 + $0x3c] sm:$0xf] %v360
  %v393 = vld [vmem:[%s3] sm:$0x1]
  %v394 = vld [vmem:[%s0] sm:$0xf]
  %v395 = vld [vmem:[%s0 + $0x4] sm:$0xf]
  %v396 = vld [vmem:[%s0 + $0x8] sm:$0xf]
  %v397 = vld [vmem:[%s0 + $0xc] sm:$0xf]
  %v398 = vld [vmem:[%s4] sm:$0x1]
  %v403 = vunpack.c.l.b16 %v394
  %v404 = vunpack.c.l.b16 %v395
  %v405 = vunpack.c.l.b16 %v396
  %v406 = vunpack.c.l.b16 %v397
  %v407 = vpack.c.b16 %v404, %v403
  %v408 = vpack.c.b16 %v406, %v405
  %v412 = vsel %vm191, %v393, 0
  %414 = vmatprep.subr.bf16.mxu0 0
  %415 = vmatpush1.bf16.msra.mxu0 0
  %416 = vmatprep.subr.bf16.mxu0 0
  %417 = vmatpush1.bf16.msra.mxu0 0
  %418 = vmatprep.subr.bf16.mxu0 0
  %419 = vmatpush1.bf16.msra.mxu0 0
  %420 = vmatprep.subr.bf16.mxu0 0
  %421 = vmatpush1.bf16.msra.mxu0 0
  %422 = vmatprep.subr.bf16.mxu0 0
  %423 = vmatpush1.bf16.msra.mxu0 0
  %424 = vmatprep.subr.bf16.mxu0 0
  %425 = vmatpush1.bf16.msra.mxu0 0
  %426 = vmatprep.subr.bf16.mxu0 0
  %427 = vmatpush1.bf16.msra.mxu0 %v408
  %428 = vmatprep.subr.bf16.mxu0 0
  %429 = vmatpush1.bf16.msra.mxu0 %v407
  %430 = vmatprep.subr.bf16.mxu0 0
  %431 = vmatpush2.bf16.msra.mxu0 0
  %432 = vmatprep.subr.bf16.mxu0 0
  %433 = vmatpush2.bf16.msra.mxu0 0
  %434 = vmatprep.subr.bf16.mxu0 0
  %435 = vmatpush2.bf16.msra.mxu0 0
  %436 = vmatprep.subr.bf16.mxu0 0
  %437 = vmatpush2.bf16.msra.mxu0 0
  %438 = vmatprep.subr.bf16.mxu0 0
  %439 = vmatpush2.bf16.msra.mxu0 0
  %440 = vmatprep.subr.bf16.mxu0 0
  %441 = vmatpush2.bf16.msra.mxu0 0
  %442 = vmatprep.subr.bf16.mxu0 0
  %443 = vmatpush2.bf16.msra.mxu0 0
  %444 = vmatprep.subr.bf16.mxu0 0
  %445 = vmatpush2.bf16.msra.mxu0 0
  %446 = vmatprep.mubr.bf16.mxu0 0
  %447 = vmatmul.mubr.bf16.gmra.mxu0 %v412
  %v448 = vpop.f32.mrf.mxu0
  %v449 = vadd.f32 %v398, %v448
  %v450 = vpop.f32.mrf.mxu0
  %v451 = vpop.f32.mrf.mxu0
  %v452 = vpop.f32.mrf.mxu0
  %453 = vdwg.mxu0
  %454 = vst [vmem:[%s6] sm:$0x1] %v449
  // Predicated region
  $region22: #{linker_forward.2} parent=0 // pred_check
    _
  $region23: #{linker_forward.2} parent=0 // pred_check_branch
    %456 = sbr.rel (0) target = $region25
  $region24: #{linker_forward.2} parent=0 // pred_region
    _
  $region25: #{linker_forward.2} parent=0 // pred_fallthru
    _
  // Predicated region
  $region26: #{linker_forward.2} parent=0 // pred_check
    _
  $region27: #{linker_forward.2} parent=0 // pred_check_branch
    %458 = sbr.rel (0) target = $region29
  $region28: #{linker_forward.2} parent=0 // pred_region
    _
  $region29: #{linker_forward.2} parent=0 // pred_fallthru
    _
  // Predicated region
  $region30: #{linker_forward.2} parent=0 // pred_check
    _
  $region31: #{linker_forward.2} parent=0 // pred_check_branch
    %460 = sbr.rel (0) target = $region33
  $region32: #{linker_forward.2} parent=0 // pred_region
    _
  $region33: #{linker_forward.2} parent=0 // pred_fallthru
    _
  // Predicated region
  $region34: #{linker_forward.2} parent=0 // pred_check
    _
  $region35: #{linker_forward.2} parent=0 // pred_check_branch
    %462 = sbr.rel (0) target = $region37
  $region36: #{linker_forward.2} parent=0 // pred_region
    _
  $region37: #{linker_forward.2} parent=0 // pred_fallthru
    _

// kernel: linker_forward.3
$region0: #{linker_forward.3}
  #allocation0 [shape = 'u32[]', space=smem, size = 0x4, offset = 0x4, fixed_abs, tag = 'smem constant byte address 0x4 - core index']
  #allocation1 [shape = 'u32[144,128]{1,0:T(1,128)}', space=vmem, size = 0x12000, scoped, tag = 'internal scratch']
  %s0 = inlined_call_operand.vmem [shape: bf16[8,32], index: 0, kind: input, shape index: {}]
  %s1 = inlined_call_operand.vmem [shape: bf16[32,128], index: 1, kind: input, shape index: {}]
  %s2 = inlined_call_operand.vmem [shape: f32[1,128], index: 2, kind: input, shape index: {}]
  %s3 = inlined_call_operand.vmem [shape: bf16[128,128], index: 3, kind: input, shape index: {}]
  %s4 = inlined_call_operand.vmem [shape: f32[1,128], index: 4, kind: input, shape index: {}]
  %s5 = inlined_call_operand.hbm [shape: f32[8,128], index: 5, kind: output, shape index: {}]
  %s6 = sld [smem:[#allocation0]]
  $region30: #{linker_forward.3} parent=0
    _
  %s8 = ssub.s32 1, %s6
  %s9 = scalar_select 0, %s8, %s6
  $region1: #{linker_forward.3} parent=0
    #allocation2 [shape = 'u8[4096]{0}', space=vmem, size = 0x1000, scoped, tag = 'output window, operand 0, single buffered']
    #allocation3 [shape = 's32[1]{0}', space=sflag, size = 0x4, scoped, tag = 'scoped memory for linker_forward.3']
    %10 = vsyncpa [#allocation3], 0
    // Predicated region
    $region2: #{linker_forward.3} parent=1 // pred_check
      _
    $region3: #{linker_forward.3} parent=1 // pred_check_branch
      %12 = sbr.rel (0) target = $region5
    $region4: #{linker_forward.3} parent=1 // pred_region
      _
    $region5: #{linker_forward.3} parent=1 // pred_fallthru
      _
    // Predicated region
    $region6: #{linker_forward.3} parent=1 // pred_check
      _
    $region7: #{linker_forward.3} parent=1 // pred_check_branch
      %14 = sbr.rel (0) target = $region9
    $region8: #{linker_forward.3} parent=1 // pred_region
      _
    $region9: #{linker_forward.3} parent=1 // pred_fallthru
      _
    // Predicated region
    $region10: #{linker_forward.3} parent=1 // pred_check
      _
    $region11: #{linker_forward.3} parent=1 // pred_check_branch
      %16 = sbr.rel (0) target = $region13
    $region12: #{linker_forward.3} parent=1 // pred_region
      _
    $region13: #{linker_forward.3} parent=1 // pred_fallthru
      _
    // Predicated region
    $region14: #{linker_forward.3} parent=1 // pred_check
      _
    $region15: #{linker_forward.3} parent=1 // pred_check_branch
      %18 = sbr.rel (0) target = $region17
    $region16: #{linker_forward.3} parent=1 // pred_region
      _
    $region17: #{linker_forward.3} parent=1 // pred_fallthru
      _
    // Predicated region
    $region18: #{linker_forward.3} parent=1 // pred_check
      _
    $region19: #{linker_forward.3} parent=1 // pred_check_branch
      %20 = sbr.rel (0) target = $region21
    $region20: #{linker_forward.3} parent=1 // pred_region
      _
    $region21: #{linker_forward.3} parent=1 // pred_fallthru
      _
    %v22 = vld [vmem:[%s0] sm:$0xf]
    %v23 = vld [vmem:[%s1] sm:$0xf]
    %v24 = vld [vmem:[%s1 + $0x4] sm:$0xf]
    %v25 = vld [vmem:[%s1 + $0x8] sm:$0xf]
    %v26 = vld [vmem:[%s1 + $0xc] sm:$0xf]
    %v27 = vld [vmem:[%s2] sm:$0x1]
    %v29 = vlaneseq
    %v30 = vshrl.u32 %v29, 7
    %v31 = vsub.s32 0, %v30
    %v32 = vrot.slane %v27, %v31
    %v38 = vunpack.c.l.b16 %v23
    %v39 = vunpack.c.l.b16 %v24
    %v40 = vunpack.c.l.b16 %v25
    %v41 = vunpack.c.l.b16 %v26
    %v42 = vpack.c.b16 %v39, %v38
    %v43 = vpack.c.b16 %v41, %v40
    %vm46 = vcmask 261120
    %v48 = vsel %vm46, %v22, 0
    %50 = vmatprep.subr.bf16.mxu0 0
    %51 = vmatpush1.bf16.msra.mxu0 0
    %52 = vmatprep.subr.bf16.mxu0 0
    %53 = vmatpush1.bf16.msra.mxu0 0
    %54 = vmatprep.subr.bf16.mxu0 0
    %55 = vmatpush1.bf16.msra.mxu0 0
    %56 = vmatprep.subr.bf16.mxu0 0
    %57 = vmatpush1.bf16.msra.mxu0 0
    %58 = vmatprep.subr.bf16.mxu0 0
    %59 = vmatpush1.bf16.msra.mxu0 0
    %60 = vmatprep.subr.bf16.mxu0 0
    %61 = vmatpush1.bf16.msra.mxu0 0
    %62 = vmatprep.subr.bf16.mxu0 0
    %63 = vmatpush1.bf16.msra.mxu0 %v43
    %64 = vmatprep.subr.bf16.mxu0 0
    %65 = vmatpush1.bf16.msra.mxu0 %v42
    %66 = vmatprep.subr.bf16.mxu0 0
    %67 = vmatpush2.bf16.msra.mxu0 0
    %68 = vmatprep.subr.bf16.mxu0 0
    %69 = vmatpush2.bf16.msra.mxu0 0
    %70 = vmatprep.subr.bf16.mxu0 0
    %71 = vmatpush2.bf16.msra.mxu0 0
    %72 = vmatprep.subr.bf16.mxu0 0
    %73 = vmatpush2.bf16.msra.mxu0 0
    %74 = vmatprep.subr.bf16.mxu0 0
    %75 = vmatpush2.bf16.msra.mxu0 0
    %76 = vmatprep.subr.bf16.mxu0 0
    %77 = vmatpush2.bf16.msra.mxu0 0
    %78 = vmatprep.subr.bf16.mxu0 0
    %79 = vmatpush2.bf16.msra.mxu0 0
    %80 = vmatprep.subr.bf16.mxu0 0
    %81 = vmatpush2.bf16.msra.mxu0 0
    %82 = vmatprep.mubr.bf16.mxu0 0
    %83 = vmatmul.mubr.bf16.gmra.mxu0 %v48
    %v84 = vpop.f32.mrf.mxu0
    %v85 = vadd.f32 %v32, %v84
    %v86 = vpop.f32.mrf.mxu0
    %v87 = vpop.f32.mrf.mxu0
    %v88 = vpop.f32.mrf.mxu0
    %89 = vdwg.mxu0
    %v90 = vpack.c.bf16 %v85, %v85
    %v91 = vld [vmem:[%s3] sm:$0xf]
    %v92 = vld [vmem:[%s3 + $0x4] sm:$0xf]
    %v93 = vld [vmem:[%s3 + $0x8] sm:$0xf]
    %v94 = vld [vmem:[%s3 + $0xc] sm:$0xf]
    %v95 = vld [vmem:[%s3 + $0x10] sm:$0xf]
    %v96 = vld [vmem:[%s3 + $0x14] sm:$0xf]
    %v97 = vld [vmem:[%s3 + $0x18] sm:$0xf]
    %v98 = vld [vmem:[%s3 + $0x1c] sm:$0xf]
    %v99 = vld [vmem:[%s3 + $0x20] sm:$0xf]
    %v100 = vld [vmem:[%s3 + $0x24] sm:$0xf]
    %v101 = vld [vmem:[%s3 + $0x28] sm:$0xf]
    %v102 = vld [vmem:[%s3 + $0x2c] sm:$0xf]
    %v103 = vld [vmem:[%s3 + $0x30] sm:$0xf]
    %v104 = vld [vmem:[%s3 + $0x34] sm:$0xf]
    %v105 = vld [vmem:[%s3 + $0x38] sm:$0xf]
    %v106 = vld [vmem:[%s3 + $0x3c] sm:$0xf]
    %v107 = vld [vmem:[%s4] sm:$0x1]
    %v109 = vlaneseq
    %v110 = vshrl.u32 %v109, 7
    %v111 = vsub.s32 0, %v110
    %v112 = vrot.slane %v107, %v111
    %v130 = vunpack.c.l.b16 %v91
    %v131 = vunpack.c.l.b16 %v92
    %v132 = vunpack.c.l.b16 %v93
    %v133 = vunpack.c.l.b16 %v94
    %v134 = vunpack.c.l.b16 %v95
    %v135 = vunpack.c.l.b16 %v96
    %v136 = vunpack.c.l.b16 %v97
    %v137 = vunpack.c.l.b16 %v98
    %v138 = vunpack.c.l.b16 %v99
    %v139 = vunpack.c.l.b16 %v100
    %v140 = vunpack.c.l.b16 %v101
    %v141 = vunpack.c.l.b16 %v102
    %v142 = vunpack.c.l.b16 %v103
    %v143 = vunpack.c.l.b16 %v104
    %v144 = vunpack.c.l.b16 %v105
    %v145 = vunpack.c.l.b16 %v106
    %v146 = vpack.c.b16 %v131, %v130
    %v147 = vpack.c.b16 %v133, %v132
    %v148 = vpack.c.b16 %v135, %v134
    %v149 = vpack.c.b16 %v137, %v136
    %v150 = vpack.c.b16 %v139, %v138
    %v151 = vpack.c.b16 %v141, %v140
    %v152 = vpack.c.b16 %v143, %v142
    %v153 = vpack.c.b16 %v145, %v144
    %162 = vmatprep.subr.bf16.mxu0 0
    %163 = vmatpush1.bf16.msra.mxu0 %v153
    %164 = vmatprep.subr.bf16.mxu0 0
    %165 = vmatpush1.bf16.msra.mxu0 %v152
    %166 = vmatprep.subr.bf16.mxu0 0
    %167 = vmatpush1.bf16.msra.mxu0 %v151
    %168 = vmatprep.subr.bf16.mxu0 0
    %169 = vmatpush1.bf16.msra.mxu0 %v150
    %170 = vmatprep.subr.bf16.mxu0 0
    %171 = vmatpush1.bf16.msra.mxu0 %v149
    %172 = vmatprep.subr.bf16.mxu0 0
    %173 = vmatpush1.bf16.msra.mxu0 %v148
    %174 = vmatprep.subr.bf16.mxu0 0
    %175 = vmatpush1.bf16.msra.mxu0 %v147
    %176 = vmatprep.subr.bf16.mxu0 0
    %177 = vmatpush1.bf16.msra.mxu0 %v146
    %178 = vmatprep.subr.bf16.mxu0 0
    %179 = vmatpush2.bf16.msra.mxu0 0
    %180 = vmatprep.subr.bf16.mxu0 0
    %181 = vmatpush2.bf16.msra.mxu0 0
    %182 = vmatprep.subr.bf16.mxu0 0
    %183 = vmatpush2.bf16.msra.mxu0 0
    %184 = vmatprep.subr.bf16.mxu0 0
    %185 = vmatpush2.bf16.msra.mxu0 0
    %186 = vmatprep.subr.bf16.mxu0 0
    %187 = vmatpush2.bf16.msra.mxu0 0
    %188 = vmatprep.subr.bf16.mxu0 0
    %189 = vmatpush2.bf16.msra.mxu0 0
    %190 = vmatprep.subr.bf16.mxu0 0
    %191 = vmatpush2.bf16.msra.mxu0 0
    %192 = vmatprep.subr.bf16.mxu0 0
    %193 = vmatpush2.bf16.msra.mxu0 0
    %194 = vmatprep.mubr.bf16.mxu0 0
    %195 = vmatmul.mubr.bf16.gmra.mxu0 %v90
    %v196 = vpop.f32.mrf.mxu0
    %v197 = vadd.f32 %v112, %v196
    %v198 = vpop.f32.mrf.mxu0
    %v199 = vpop.f32.mrf.mxu0
    %v200 = vpop.f32.mrf.mxu0
    %201 = vdwg.mxu0
    %202 = vmax.xlane.f32.xlu0 %v197
    %v203 = vpop.xlane.xlu0 %202
    %v204 = vsub.f32 %v197, %v203
    %v205 = vmul.f32 %v204, 1.442695
    %v206 = vpow.pop %v205
    %207 = vadd.xlane.f32.xlu0 %v206
    %v208 = vpop.xlane.xlu0 %207
    %v209 = vlog2.pop %v208
    %v210 = vmul.f32 %v209, 0.6931472
    %v211 = vsub.f32 %v210, %v204
    %212 = vst [vmem:[#allocation2] sm:$0xff] %v211
    // Predicated region
    $region22: #{linker_forward.3} parent=1 // pred_check
      _
    $region23: #{linker_forward.3} parent=1 // pred_check_branch
      %214 = sbr.rel (0) target = $region25
    $region24: #{linker_forward.3} parent=1 // pred_region
      %s216 = ssub.s32 128, 128
      %217 = vsyncadd [#allocation3], %s216
      %s219 = sshll.u32 [#allocation2], 4
      %s220 = int_to_ptr.vmem [resolvable:$true] %s219
      %222 = dma.vmem_to_hbm [thread:$0]  %s220, 128, %s5, [#allocation3]
    $region25: #{linker_forward.3} parent=1 // pred_fallthru
      _
    // Predicated region
    $region26: #{linker_forward.3} parent=1 // pred_check
      _
    $region27: #{linker_forward.3} parent=1 // pred_check_branch
      %224 = sbr.rel (0) target = $region29
    $region28: #{linker_forward.3} parent=1 // pred_region
      %225 = dma.done [#allocation3], 128
    $region29: #{linker_forward.3} parent=1 // pred_fallthru
      _
    %226 = vsyncpa [#allocation3], 1

</llo_original>
